<compile_context>
chip_gen: v5e
topology: v5e:2x2
jax: 0.10.0
libtpu: 0.0.40
codegen_flags: <defaults>
</compile_context>

<pallas_src>
import functools

import jax
import jax.numpy as jnp
from jax.experimental import pallas as pl
from jax.experimental.pallas import tpu as pltpu


LF_PRIMITIVES = ["lf_sum", "lf_mean", "lf_max", "lf_concat", "lf_att"]


# ----------------------------------------------------------------------------
# VMEM budgeting / tiling
# ----------------------------------------------------------------------------
def _vmem_budget():
    """Returns (scoped vmem_limit_bytes, per-call tile-working-set budget)."""
    try:
        cap = int(pltpu.get_tpu_info().vmem_capacity_bytes)
    except Exception:
        cap = 0
    if cap >= 96 * 1024 * 1024:            # v5e / v6e: 128 MiB physical VMEM
        return 96 * 1024 * 1024, 24 * 1024 * 1024
    if cap >= 48 * 1024 * 1024:            # v7x: 64 MiB per TensorCore
        return 40 * 1024 * 1024, 10 * 1024 * 1024
    # Introspection unavailable -> conservative defaults, safe on every part.
    return 32 * 1024 * 1024, 8 * 1024 * 1024


def _sublane_align(itemsize):
    # Sub-32-bit dtypes pack along sublanes: 8 rows (f32), 16 (bf16), 32 (i8).
    return max(8, (8 * 4) // max(int(itemsize), 1))


def _pick_tile_n(layers_per_step, n, hidden_dim, in_itemsize, out_itemsize, *,
                 budget, resident_bytes=0, f32_rows=2):
    """Largest aligned N-tile whose double-buffered working set fits `budget`.

    `resident_bytes` accounts for weights / scratch that do not scale with the
    tile (e.g. the resident lf_concat weight block and its pipeline copy).
    """
    align = _sublane_align(in_itemsize)
    per_row = 2 * layers_per_step * hidden_dim * in_itemsize   # fts tile, x2 buffers
    per_row += 2 * hidden_dim * out_itemsize                   # out tile, x2 buffers
    per_row += f32_rows * hidden_dim * 4                       # live f32 temporaries
    avail = max(budget - resident_bytes, per_row * align)
    tile = avail // per_row
    tile -= tile % align
    tile = max(tile, align)
    if tile >= n:
        # Whole extent fits: split into >=2 aligned tiles so both v7x
        # TensorCores get work (negligible cost on single-TC v5e/v6e).
        if n >= 2 * align:
            half = ((n // 2) // align) * align
            return max(half, align)
        return n                           # full-extent block is always legal
    return tile


def _compiler_params(dimension_semantics, vmem_limit):
    return pltpu.CompilerParams(
        dimension_semantics=dimension_semantics,
        vmem_limit_bytes=vmem_limit,
    )


# ----------------------------------------------------------------------------
# Kernels
# ----------------------------------------------------------------------------
def _reduce_kernel(fts_ref, o_ref, *, mode, layer_num):
    # fts_ref: (L, TILE_N, H); o_ref: (TILE_N, H)
    if mode == "max":
        # Exact in the input dtype -> no full-block f32 cast.
        acc = fts_ref[0]
        for l in range(1, layer_num):
            acc = jnp.maximum(acc, fts_ref[l])
        o_ref[...] = acc.astype(o_ref.dtype)
        return
    acc = fts_ref[0].astype(jnp.float32)
    for l in range(1, layer_num):            # static unroll, L is small
        acc = acc + fts_ref[l].astype(jnp.float32)
    if mode == "mean":
        acc = acc * (1.0 / layer_num)
    o_ref[...] = acc.astype(o_ref.dtype)


def _concat_linear_resident_kernel(fts_ref, w_ref, b_ref, o_ref, *, layer_num):
    # fts_ref: (L, TILE_N, H); w_ref: (L, H, H) bf16 (resident); b_ref: (1, H)
    # concat-then-Linear == sum_l fts[l] @ W[l]   (W viewed as (L, H, H)).
    acc = jnp.zeros(o_ref.shape, jnp.float32)
    for l in range(layer_num):               # static unroll, L is small
        acc = acc + jnp.dot(fts_ref[l].astype(jnp.bfloat16), w_ref[l],
                            preferred_element_type=jnp.float32)
    o_ref[...] = (acc + b_ref[...].astype(jnp.float32)).astype(o_ref.dtype)


def _concat_linear_grid_kernel(fts_ref, w_ref, b_ref, o_ref, acc_ref):
    # L is a reduction grid axis: fts_ref (1, TILE_N, H); w_ref (1, H, H) bf16;
    # b_ref (1, H); o_ref (TILE_N, H); acc_ref (TILE_N, H) f32 scratch.
    l = pl.program_id(1)

    @pl.when(l == 0)
    def _():
        acc_ref[...] = jnp.zeros_like(acc_ref)

    acc_ref[...] += jnp.dot(fts_ref[0].astype(jnp.bfloat16), w_ref[0],
                            preferred_element_type=jnp.float32)

    @pl.when(l == pl.num_programs(1) - 1)
    def _():
        o_ref[...] = (acc_ref[...] + b_ref[...].astype(jnp.float32)
                      ).astype(o_ref.dtype)


def _att_kernel(fts_ref, a_ref, o_ref, *, layer_num, neg_slope=0.2):
    # fts_ref: (L, TILE_N, H); a_ref: (1, H); o_ref: (TILE_N, H)
    # Two per-layer passes; no full-block f32 copy.  All softmax intermediates
    # keep the (TILE_N, 1) keepdims layout so TILE_N stays in sublanes
    # throughout (no lanes<->sublanes relayout against the (TILE_N, H) tiles).
    a = a_ref[...].astype(jnp.float32)                     # (1, H)

    # Pass 1: per-layer logits.
    logits = []
    for l in range(layer_num):
        s = jnp.sum(fts_ref[l].astype(jnp.float32) * a,
                    axis=-1, keepdims=True)                # (TILE_N, 1)
        logits.append(jnp.where(s > 0, s, neg_slope * s))  # leaky_relu(0.2)

    m = logits[0]
    for l in range(1, layer_num):
        m = jnp.maximum(m, logits[l])
    es = [jnp.exp(logits[l] - m) for l in range(layer_num)]
    denom = es[0]
    for l in range(1, layer_num):
        denom = denom + es[l]
    inv = 1.0 / denom                                      # exact; op is mem-bound

    # Pass 2: attention-weighted sum, per layer.
    acc = jnp.zeros(o_ref.shape, jnp.float32)
    for l in range(layer_num):
        acc = acc + (es[l] * inv) * fts_ref[l].astype(jnp.float32)
    o_ref[...] = acc.astype(o_ref.dtype)


# ----------------------------------------------------------------------------
# Wrappers (grid over N, double-buffered tiles)
# ----------------------------------------------------------------------------
def _run_reduce(fts, mode):
    L, N, H = fts.shape
    vmem_limit, budget = _vmem_budget()
    itemsize = fts.dtype.itemsize
    f32_rows = 1 if mode == "max" else 2
    tn = _pick_tile_n(L, N, H, itemsize, itemsize, budget=budget,
                      f32_rows=f32_rows)
    cost = pl.CostEstimate(
        flops=int(L * N * H),
        transcendentals=0,
        bytes_accessed=int((L + 1) * N * H * itemsize),
    )
    return pl.pallas_call(
        functools.partial(_reduce_kernel, mode=mode, layer_num=L),
        out_shape=jax.ShapeDtypeStruct((N, H), fts.dtype),
        grid=(pl.cdiv(N, tn),),
        in_specs=[pl.BlockSpec((L, tn, H), lambda i: (0, i, 0))],
        out_specs=pl.BlockSpec((tn, H), lambda i: (i, 0)),
        compiler_params=_compiler_params(("parallel",), vmem_limit),
        cost_estimate=cost,
    )(fts)


def _run_concat_linear(fts, w, b, force_grid_l=None):
    L, N, H = fts.shape
    vmem_limit, budget = _vmem_budget()
    itemsize = fts.dtype.itemsize
    # bf16 weights: fast MXU path + half the resident footprint.
    w3 = w.reshape(L, H, H).astype(jnp.bfloat16)
    b2 = b.reshape(1, H)
    w_bytes = L * H * H * 2
    use_grid_l = (2 * w_bytes) > (budget // 2) if force_grid_l is None \
        else bool(force_grid_l)
    cost = pl.CostEstimate(
        flops=int(2 * L * N * H * H),
        transcendentals=0,
        bytes_accessed=int((L + 1) * N * H * itemsize + w_bytes + H * 4),
    )

    if not use_grid_l:
        # Small weights: keep them resident, statically unroll over layers.
        resident = 2 * w_bytes + 2 * H * 4      # weight + bias, x2 pipeline bufs
        tn = _pick_tile_n(L, N, H, itemsize, itemsize, budget=budget,
                          resident_bytes=resident, f32_rows=2)
        return pl.pallas_call(
            functools.partial(_concat_linear_resident_kernel, layer_num=L),
            out_shape=jax.ShapeDtypeStruct((N, H), fts.dtype),
            grid=(pl.cdiv(N, tn),),
            in_specs=[pl.BlockSpec((L, tn, H), lambda i: (0, i, 0)),
                      pl.BlockSpec((L, H, H), lambda i: (0, 0, 0)),   # resident W
                      pl.BlockSpec((1, H), lambda i: (0, 0))],        # resident b
            out_specs=pl.BlockSpec((tn, H), lambda i: (i, 0)),
            compiler_params=_compiler_params(("parallel",), vmem_limit),
            cost_estimate=cost,
        )(fts, w3, b2)

    # Large L*H*H: make L a reduction grid axis; per-step working set is just
    # one (H,H) weight block + one (TILE_N,H) fts block (pipelined).
    resident = 2 * H * H * 2 + 2 * H * 4       # per-step weight blocks + bias
    tn = _pick_tile_n(1, N, H, itemsize, itemsize, budget=budget,
                      resident_bytes=resident, f32_rows=3)
    return pl.pallas_call(
        _concat_linear_grid_kernel,
        out_shape=jax.ShapeDtypeStruct((N, H), fts.dtype),
        grid=(pl.cdiv(N, tn), L),
        in_specs=[pl.BlockSpec((1, tn, H), lambda i, l: (l, i, 0)),
                  pl.BlockSpec((1, H, H), lambda i, l: (l, 0, 0)),
                  pl.BlockSpec((1, H), lambda i, l: (0, 0))],
        out_specs=pl.BlockSpec((tn, H), lambda i, l: (i, 0)),
        scratch_shapes=[pltpu.VMEM((tn, H), jnp.float32)],
        compiler_params=_compiler_params(("parallel", "arbitrary"), vmem_limit),
        cost_estimate=cost,
    )(fts, w3, b2)


def _run_att(fts, a):
    L, N, H = fts.shape
    vmem_limit, budget = _vmem_budget()
    itemsize = fts.dtype.itemsize
    tn = _pick_tile_n(L, N, H, itemsize, itemsize, budget=budget,
                      resident_bytes=2 * H * 4, f32_rows=3)
    cost = pl.CostEstimate(
        flops=int(5 * L * N * H),
        transcendentals=int(L * N),
        bytes_accessed=int((L + 1) * N * H * itemsize + H * 4),
    )
    return pl.pallas_call(
        functools.partial(_att_kernel, layer_num=L),
        out_shape=jax.ShapeDtypeStruct((N, H), fts.dtype),
        grid=(pl.cdiv(N, tn),),
        in_specs=[pl.BlockSpec((L, tn, H), lambda i: (0, i, 0)),
                  pl.BlockSpec((1, H), lambda i: (0, 0))],            # resident a
        out_specs=pl.BlockSpec((tn, H), lambda i: (i, 0)),
        compiler_params=_compiler_params(("parallel",), vmem_limit),
        cost_estimate=cost,
    )(fts, a.reshape(1, H))


class LfOpBlock:
    """JAX/Pallas port of the PyTorch LfOpBlock (single-path op dispatch)."""

    def __init__(self, hidden_dim, layer_num, key=None):
        self.hidden_dim = hidden_dim
        self.layer_num = layer_num
        key = jax.random.PRNGKey(42) if key is None else key
        k_w, k_b, k_a = jax.random.split(key, 3)
        # Deterministic synthetic parameters (shapes follow the op definitions).
        scale = 1.0 / jnp.sqrt(jnp.float32(layer_num * hidden_dim))
        self.concat_w = (jax.random.normal(k_w, (layer_num * hidden_dim, hidden_dim),
                                           jnp.float32) * scale)
        self.concat_b = jax.random.normal(k_b, (hidden_dim,), jnp.float32) * 0.01
        self.att_a = jax.random.normal(k_a, (hidden_dim,), jnp.float32) * (
            1.0 / jnp.sqrt(jnp.float32(hidden_dim)))

    def __call__(self, fts, primitive):
        # fts: (layer_num, N, hidden_dim); primitive: python string (host-side
        # dispatch, same as the PyTorch ModuleList index lookup).
        assert primitive in LF_PRIMITIVES, primitive
        assert fts.shape[0] == self.layer_num and fts.shape[-1] == self.hidden_dim
        if primitive == "lf_sum":
            return _run_reduce(fts, "sum")
        if primitive == "lf_mean":
            return _run_reduce(fts, "mean")
        if primitive == "lf_max":
            return _run_reduce(fts, "max")
        if primitive == "lf_concat":
            return _run_concat_linear(fts, self.concat_w, self.concat_b)
        # lf_att
        return _run_att(fts, self.att_a)


# ----------------------------------------------------------------------------
# Pure-JAX references (sanity checking)
# ----------------------------------------------------------------------------
def _ref(block, fts, primitive):
    L, N, H = fts.shape
    if primitive == "lf_sum":
        return jnp.sum(fts, axis=0)
    if primitive == "lf_mean":
        return jnp.mean(fts, axis=0)
    if primitive == "lf_max":
        return jnp.max(fts, axis=0)
    if primitive == "lf_concat":
        x = jnp.transpose(fts, (1, 0, 2)).reshape(N, L * H)
        return x @ block.concat_w + block.concat_b
    # lf_att
    s = jnp.einsum("lnh,h->ln", fts, block.att_a)[..., None]
    s = jnp.where(s > 0, s, 0.2 * s)
    alpha = jax.nn.softmax(s, axis=0)
    return jnp.sum(alpha * fts, axis=0)


if __name__ == "__main__":
    layer_num, batch, hidden_dim = 3, 16, 32
    key = jax.random.PRNGKey(0)
    fts = jax.random.normal(key, (layer_num, batch, hidden_dim), jnp.float32)

    block = LfOpBlock(hidden_dim, layer_num, key=jax.random.PRNGKey(1))

    # lf_concat runs the MXU in bf16 (f32 accumulation) -> looser tolerance.
    tols = {"lf_sum": 1e-4, "lf_mean": 1e-4, "lf_max": 1e-4,
            "lf_concat": 3e-2, "lf_att": 1e-3}

    ok = True
    for prim in LF_PRIMITIVES:
        out = jax.block_until_ready(block(fts, prim))
        ref = _ref(block, fts, prim)
        if out.shape != (batch, hidden_dim):
            ok = False
        if not jnp.allclose(out, ref, atol=tols[prim], rtol=tols[prim]):
            ok = False

    # Also exercise the grid-over-L lf_concat variant (used for large L*H*H).
    out_g = jax.block_until_ready(
        _run_concat_linear(fts, block.concat_w, block.concat_b, force_grid_l=True))
    if not jnp.allclose(out_g, _ref(block, fts, "lf_concat"), atol=3e-2, rtol=3e-2):
        ok = False

    print("KERNEL_OK" if ok else "KERNEL_MISMATCH")
</pallas_src>

<mosaic_0001>
module attributes {stable_mosaic.version = 11 : i64} {
  func.func @_reduce_kernel(%arg0: i32, %arg1: memref<3x8x32xf32, #tpu.memory_space<vmem>>, %arg2: memref<8x32xf32, #tpu.memory_space<vmem>>) attributes {dimension_semantics = [#tpu.dimension_semantics<parallel>], iteration_bounds = array<i64: 2>, scalar_prefetch = 0 : i64, scratch_operands = 0 : i64, tpu.core_type = #tpu.core_type<tc>, window_params = [{transform_indices = @transform_0, window_bounds = array<i64: 3, 8, 32>}, {transform_indices = @transform_1, window_bounds = array<i64: 8, 32>}]} {
    %c0 = arith.constant 0 : index
    %c0_0 = arith.constant 0 : index
    %c0_1 = arith.constant 0 : index
    %0 = vector.load %arg1[%c0, %c0_0, %c0_1] : memref<3x8x32xf32, #tpu.memory_space<vmem>>, vector<1x8x32xf32>
    %1 = vector.shape_cast %0 : vector<1x8x32xf32> to vector<8x32xf32>
    %c1 = arith.constant 1 : index
    %c0_2 = arith.constant 0 : index
    %c0_3 = arith.constant 0 : index
    %2 = vector.load %arg1[%c1, %c0_2, %c0_3] : memref<3x8x32xf32, #tpu.memory_space<vmem>>, vector<1x8x32xf32>
    %3 = vector.shape_cast %2 : vector<1x8x32xf32> to vector<8x32xf32>
    %4 = arith.addf %1, %3 : vector<8x32xf32>
    %c2 = arith.constant 2 : index
    %c0_4 = arith.constant 0 : index
    %c0_5 = arith.constant 0 : index
    %5 = vector.load %arg1[%c2, %c0_4, %c0_5] : memref<3x8x32xf32, #tpu.memory_space<vmem>>, vector<1x8x32xf32>
    %6 = vector.shape_cast %5 : vector<1x8x32xf32> to vector<8x32xf32>
    %7 = arith.addf %4, %6 : vector<8x32xf32>
    %c0_6 = arith.constant 0 : index
    %c0_7 = arith.constant 0 : index
    %8 = vector.load %arg2[%c0_6, %c0_7] : memref<8x32xf32, #tpu.memory_space<vmem>>, vector<8x32xf32>
    tpu.vector_store %arg2[%c0_6, %c0_7], %7 {strides = array<i32>} : memref<8x32xf32, #tpu.memory_space<vmem>>, vector<8x32xf32>,
    return
  }
  func.func @transform_0(%arg0: i32) -> (i32, i32, i32) {
    %c0_i32 = arith.constant 0 : i32
    %c0_i32_0 = arith.constant 0 : i32
    %c0_i32_1 = arith.constant 0 : i32
    return %c0_i32, %arg0, %c0_i32_0 : i32, i32, i32
  }
  func.func @transform_1(%arg0: i32) -> (i32, i32) {
    %c0_i32 = arith.constant 0 : i32
    %c0_i32_0 = arith.constant 0 : i32
    return %arg0, %c0_i32 : i32, i32
  }
}

</mosaic_0001>

<llo_original>
// kernel: tpu_custom_call.1
$region0: #{tpu_custom_call.1}
  #allocation0 [shape = 'u32[]', space=smem, size = 0x4, offset = 0x4, fixed_abs, tag = 'smem constant byte address 0x4 - core index']
  #allocation1 [shape = 'u32[72,128]{1,0:T(1,128)}', space=vmem, size = 0x9000, scoped, tag = 'internal scratch']
  %s0 = inlined_call_operand.hbm [shape: f32[3,16,32], index: 0, kind: input, shape index: {}]
  %s1 = inlined_call_operand.hbm [shape: f32[16,32], index: 1, kind: output, shape index: {}]
  %s2 = sld [smem:[#allocation0]]
  $region41: #{tpu_custom_call.1} parent=0
    _
  %s4 = ssub.s32 1, %s2
  %s5 = scalar_select 0, %s4, %s2
  $region1: #{tpu_custom_call.1} parent=0
    #allocation2 [shape = 'u8[24576]{0}', space=vmem, size = 0x6000, scoped, tag = 'input window, operand 0']
    #allocation3 [shape = 's32[2]{0}', space=sflag, size = 0x8, scoped, tag = 'scoped memory for tpu_custom_call.1']
    #allocation4 [shape = 's32[2]{0}', space=sflag, size = 0x8, scoped, tag = 'scoped memory for tpu_custom_call.1']
    #allocation5 [shape = 'u8[8192]{0}', space=vmem, size = 0x2000, scoped, tag = 'output window, operand 0']
    %6 = vsyncpa [#allocation3], 0
    %s7 = scalar_lea.sflag [#allocation3], 1
    %8 = vsyncpa %s7, 0
    %9 = vsyncpa [#allocation4], 0
    %s10 = scalar_lea.sflag [#allocation4], 1
    %11 = vsyncpa %s10, 0
    loop: start=0, step=1, limit=4
    $region2: #{tpu_custom_call.1} parent=1 // loop_pre_header
      _
    $region3: #{tpu_custom_call.1} parent=1 // loop_header
      %s13 = sphi 0, %s17
      %p14 = scmp.ge.s32.totalorder %s13, 4
      %s23 = sphi 0, %s25
      %s26 = sphi 0, %s23
      %s27 = sphi 0, %s26
      %s43 = sphi 0, %s27
      %s49 = sphi 0, %s51
      %s52 = sphi 0, %s49
      %s53 = sphi 0, %s52
      %s69 = sphi 0, %s53
    $region4: #{tpu_custom_call.1} parent=1 // loop_header_branch
      %16 = sbr.rel (%p14) target = $region8
    $region5: #{tpu_custom_call.1} parent=1 // loop_body
      %s18 = ssub.s32 %s13, 1
      %s19 = ssub.s32 %s13, 2
      %s20 = sadd.s32 %s13, 1
      %s21 = ssub.s32 %s13, %s20
      %p22 = scmp.eq.s32.totalorder %s21, 0
      %s24 = sadd.s32 %s23, 1
      %s25 = scalar_select %p22, %s23, %s24
      %p28 = pneg %p22
      %p29 = scmp.eq.s32.totalorder %s13, 1
      %p30 = por %p28, %p29
      %p31 = scmp.ne.s32.totalorder %s23, %s26
      %p32 = scmp.eq.s32.totalorder %s13, 0
      %p33 = por %p31, %p32
      %p34 = scmp.ne.s32.totalorder %s23, %s26
      %p35 = scmp.eq.s32.totalorder %s18, 1
      %p36 = por %p34, %p35
      %p37 = scmp.ne.s32.totalorder %s26, %s27
      %p38 = scmp.eq.s32.totalorder %s18, 0
      %p39 = por %p37, %p38
      %p40 = scmp.ne.s32.totalorder %s26, %s27
      %p41 = scmp.eq.s32.totalorder %s19, 1
      %p42 = por %p40, %p41
      %p44 = scmp.ne.s32.totalorder %s27, %s43
      %p45 = scmp.eq.s32.totalorder %s19, 0
      %p46 = por %p44, %p45
      %s47 = ssub.s32 %s13, %s20
      %p48 = scmp.eq.s32.totalorder %s47, 0
      %s50 = sadd.s32 %s49, 1
      %s51 = scalar_select %p48, %s49, %s50
      %p54 = pneg %p48
      %p55 = scmp.eq.s32.totalorder %s13, 1
      %p56 = por %p54, %p55
      %p57 = scmp.ne.s32.totalorder %s49, %s52
      %p58 = scmp.eq.s32.totalorder %s13, 0
      %p59 = por %p57, %p58
      %p60 = scmp.ne.s32.totalorder %s49, %s52
      %p61 = scmp.eq.s32.totalorder %s18, 1
      %p62 = por %p60, %p61
      %p63 = scmp.ne.s32.totalorder %s52, %s53
      %p64 = scmp.eq.s32.totalorder %s18, 0
      %p65 = por %p63, %p64
      %p66 = scmp.ne.s32.totalorder %s52, %s53
      %p67 = scmp.eq.s32.totalorder %s19, 1
      %p68 = por %p66, %p67
      %p70 = scmp.ne.s32.totalorder %s53, %s69
      %p71 = scmp.eq.s32.totalorder %s19, 0
      %p72 = por %p70, %p71
      %p73 = scmp.le.s32.totalorder 1, %s13
      %p74 = scmp.lt.s32.totalorder %s13, 3
      %p75 = pnand %p73, %p74
      %p76 = pneg %p75
      // Predicated region
      $region9: #{tpu_custom_call.1} parent=5 // pred_check
        _
      $region10: #{tpu_custom_call.1} parent=5 // pred_check_branch
        %78 = sbr.rel (%p75) target = $region12
      $region11: #{tpu_custom_call.1} parent=5 // pred_region
        %s79 = ssub.s32 %s13, 1
      $region12: #{tpu_custom_call.1} parent=5 // pred_fallthru
        _
      %p80 = scmp.lt.s32.totalorder %s13, 2
      // Predicated region
      $region13: #{tpu_custom_call.1} parent=5 // pred_check
        %p81 = pneg %p80
      $region14: #{tpu_custom_call.1} parent=5 // pred_check_branch
        %83 = sbr.rel (%p81) target = $region16
      $region15: #{tpu_custom_call.1} parent=5 // pred_region
        // Predicated region
        $region17: #{tpu_custom_call.1} parent=15 // pred_check
          %p84 = pneg %p33
        $region18: #{tpu_custom_call.1} parent=15 // pred_check_branch
          %86 = sbr.rel (%p84) target = $region20
        $region19: #{tpu_custom_call.1} parent=15 // pred_region
          %s87 = sand.u32 %s23, 1
          %s88 = scalar_lea.sflag [#allocation3], %s87
          %s89 = sand.u32 %s23, 1
          %s90 = smul.addr %s89, 24
          %s91 = scalar_lea.vmem [#allocation2], %s90
          %93 = vsyncadd %s88, 0
          %s94 = smul.addr %s13, 8
          %s95 = scalar_lea.hbm %s0, %s94
          %s96 = sshll.u32 %s95, 4
          %s97 = int_to_ptr.hbm [resolvable:$true] %s96
          %s98 = sshll.u32 %s91, 4
          %s99 = int_to_ptr.vmem [resolvable:$true] %s98
          %104 = dma.hbm_to_vmem [thread:$0]  %s97, 384, %s99, %s88, 256, 128, 8
        $region20: #{tpu_custom_call.1} parent=15 // pred_fallthru
          _
      $region16: #{tpu_custom_call.1} parent=5 // pred_fallthru
        _
      %p105 = scmp.le.s32.totalorder 1, %s13
      %p106 = scmp.lt.s32.totalorder %s13, 3
      %p107 = pnand %p105, %p106
      %p108 = pneg %p107
      // Predicated region
      $region21: #{tpu_custom_call.1} parent=5 // pred_check
        _
      $region22: #{tpu_custom_call.1} parent=5 // pred_check_branch
        %110 = sbr.rel (%p107) target = $region24
      $region23: #{tpu_custom_call.1} parent=5 // pred_region
        %s111 = ssub.s32 %s13, 1
        %s112 = sand.u32 %s26, 1
        %s113 = scalar_lea.sflag [#allocation3], %s112
        %s114 = sand.u32 %s26, 1
        %s115 = smul.addr %s114, 24
        %s116 = scalar_lea.vmem [#allocation2], %s115
        // Predicated region
        $region25: #{tpu_custom_call.1} parent=23 // pred_check
          %p117 = pneg %p39
        $region26: #{tpu_custom_call.1} parent=23 // pred_check_branch
          %119 = sbr.rel (%p117) target = $region28
        $region27: #{tpu_custom_call.1} parent=23 // pred_region
          %121 = dma.done %s113, 384
        $region28: #{tpu_custom_call.1} parent=23 // pred_fallthru
          _
        %s122 = sand.u32 %s26, 1
        %s123 = scalar_lea.sflag [#allocation3], %s122
        %s124 = sand.u32 %s26, 1
        %s125 = smul.addr %s124, 24
        %s126 = scalar_lea.vmem [#allocation2], %s125
        %p127 = pneg %p39
        %p128 = pneg %p36
        %p129 = pneg %p65
        %p130 = pneg %p62
        %s131 = sand.u32 %s52, 1
        %s132 = scalar_lea.sflag [#allocation4], %s131
        %s133 = sand.u32 %s52, 1
        %s134 = smul.addr %s133, 8
        %s135 = scalar_lea.vmem [#allocation5], %s134
        %v136 = vld [vmem:[%s116] sm:$0xff]
        %s137 = scalar_lea.vmem %s116, 8 [#allocation2]
        %v138 = vld [vmem:[%s137] sm:$0xff]
        %v139 = vadd.f32 %v136, %v138
        %s140 = scalar_lea.vmem %s116, 16 [#allocation2]
        %v141 = vld [vmem:[%s140] sm:$0xff]
        %v142 = vadd.f32 %v139, %v141
        %vm143 = vcmask 261120
        %144 = vst.msk [vmem:[%s135] sm:$0xff] %vm143, %v142
        %s145 = sand.u32 %s52, 1
        %s146 = scalar_lea.sflag [#allocation4], %s145
        %s147 = sand.u32 %s52, 1
        %s148 = smul.addr %s147, 8
        %s149 = scalar_lea.vmem [#allocation5], %s148
        // Predicated region
        $region29: #{tpu_custom_call.1} parent=23 // pred_check
          %p150 = pneg %p62
        $region30: #{tpu_custom_call.1} parent=23 // pred_check_branch
          %152 = sbr.rel (%p150) target = $region32
        $region31: #{tpu_custom_call.1} parent=23 // pred_region
          %154 = vsyncadd %s146, 0
          %s155 = smul.addr %s18, 8
          %s156 = scalar_lea.hbm %s1, %s155
          %s158 = sshll.u32 %s149, 4
          %s159 = int_to_ptr.vmem [resolvable:$true] %s158
          %s160 = sshll.u32 %s156, 4
          %s161 = int_to_ptr.hbm [resolvable:$true] %s160
          %163 = dma.vmem_to_hbm [thread:$0]  %s159, 128, %s161, %s146
        $region32: #{tpu_custom_call.1} parent=23 // pred_fallthru
          _
      $region24: #{tpu_custom_call.1} parent=5 // pred_fallthru
        _
      %p164 = scmp.le.s32.totalorder 2, %s13
      // Predicated region
      $region33: #{tpu_custom_call.1} parent=5 // pred_check
        %p165 = pneg %p164
      $region34: #{tpu_custom_call.1} parent=5 // pred_check_branch
        %167 = sbr.rel (%p165) target = $region36
      $region35: #{tpu_custom_call.1} parent=5 // pred_region
        %s168 = ssub.s32 %s13, 2
        // Predicated region
        $region37: #{tpu_custom_call.1} parent=35 // pred_check
          %p169 = pneg %p68
        $region38: #{tpu_custom_call.1} parent=35 // pred_check_branch
          %171 = sbr.rel (%p169) target = $region40
        $region39: #{tpu_custom_call.1} parent=35 // pred_region
          %s172 = sand.u32 %s53, 1
          %s173 = scalar_lea.sflag [#allocation4], %s172
          %s174 = sand.u32 %s53, 1
          %s175 = smul.addr %s174, 8
          %s176 = scalar_lea.vmem [#allocation5], %s175
          %178 = dma.done %s173, 128
        $region40: #{tpu_custom_call.1} parent=35 // pred_fallthru
          _
      $region36: #{tpu_custom_call.1} parent=5 // pred_fallthru
        _
    $region6: #{tpu_custom_call.1} parent=1 // loop_footer
      %s17 = sadd.s32 1, %s13
    $region7: #{tpu_custom_call.1} parent=1 // loop_footer_branch
      %12 = sbr.rel target = $region3
    $region8: #{tpu_custom_call.1} parent=1 // loop_exit
      _
    %179 = vsyncpa [#allocation3], 1
    %s180 = scalar_lea.sflag [#allocation3], 1
    %181 = vsyncpa %s180, 1
    %182 = vsyncpa [#allocation4], 1
    %s183 = scalar_lea.sflag [#allocation4], 1
    %184 = vsyncpa %s183, 1

</llo_original>
